<compile_context>
chip_gen: v5e
topology: v5e:2x2
jax: 0.10.0
libtpu: 0.0.40
codegen_flags: <defaults>
</compile_context>

<pallas_src>
import functools

import jax
import jax.numpy as jnp
from jax import lax
from jax.experimental import pallas as pl
from jax.experimental.pallas import tpu as pltpu


def _round_up(x, m):
    return (x + m - 1) // m * m


def _embed_kernel(ids_ref, emb_ref, pos_ref, out_ref, *, tile_seq, seq_pad):
    """One grid step = one (tile_seq, d_model) output tile for one batch row.

    ids_ref : SMEM, flat int32 token ids of shape (B * seq_pad,)
    emb_ref : VMEM-resident (vocab, d_model) embedding table
    pos_ref : (tile_seq, d_model) positional tile (BlockSpec-pipelined)
    out_ref : (tile_seq, d_model) output tile
    """
    b = pl.program_id(0)
    s = pl.program_id(1)
    base = b * seq_pad + s * tile_seq

    def body(t, carry):
        tok = ids_ref[base + t]                               # scalar id from SMEM
        out_ref[pl.ds(t, 1), :] = emb_ref[pl.ds(tok, 1), :]   # gather one row
        return carry

    lax.fori_loop(0, tile_seq, body, 0, unroll=8)

    # Single vectorized add of the positional tile over the whole output tile.
    out_ref[...] = out_ref[...] + pos_ref[...]


def transformer_embedding(ids, emb_table, pos_table, drop_prob=0.0, *, tile_seq=256):
    """Pallas implementation of TransformerEmbedding.forward (eval mode).

    ids:        (B, S) int32 token ids
    emb_table:  (vocab, d_model) f32   (row at padding_idx=1 is zero)
    pos_table:  (max_len, d_model) f32 sinusoidal encoding
    returns:    (B, S, d_model) f32  == emb_table[ids] + pos_table[:S]
    """
    B, S = ids.shape
    vocab, d_model = emb_table.shape
    max_len = pos_table.shape[0]
    assert S <= max_len, "seq_len must be <= max_len of positional table"

    T = min(_round_up(tile_seq, 8), _round_up(S, 8))     # seq tokens per tile, mult of 8
    S_pad = _round_up(S, T)
    num_seq_tiles = S_pad // T

    # Clamp ids for gather safety; pad tail with padding_idx=1 (its row is zero).
    ids_p = jnp.clip(ids.astype(jnp.int32), 0, vocab - 1)
    ids_p = jnp.pad(ids_p, ((0, 0), (0, S_pad - S)), constant_values=1)
    ids_flat = ids_p.reshape(B * S_pad)

    # Positional rows actually used, padded to the tile grid.
    pos_used = jnp.pad(pos_table[:S].astype(jnp.float32), ((0, S_pad - S), (0, 0)))

    # VMEM budget: resident emb table + double-buffered pos tile + double-buffered out tile.
    needed = (vocab * d_model + 2 * T * d_model + 2 * T * d_model) * 4 + (4 << 20)
    vmem_limit = int(min(max(needed, 32 << 20), 128 << 20))
    # TODO(synk): for very large vocabularies where vocab*d_model*4 exceeds VMEM
    # (esp. v7x's 64 MiB), switch to a manual HBM DMA-gather path
    # (memory_space=pl.ANY + multi-deep make_async_copy) instead of a resident table.

    kernel = functools.partial(_embed_kernel, tile_seq=T, seq_pad=S_pad)
    out_flat = pl.pallas_call(
        kernel,
        out_shape=jax.ShapeDtypeStruct((B * S_pad, d_model), jnp.float32),
        grid_spec=pltpu.PrefetchScalarGridSpec(
            num_scalar_prefetch=1,                      # ids_flat -> SMEM
            grid=(B, num_seq_tiles),
            in_specs=[
                pl.BlockSpec(memory_space=pltpu.MemorySpace.VMEM),      # emb table resident
                pl.BlockSpec((T, d_model), lambda b, s, ids: (s, 0)),   # pos tile (pipelined)
            ],
            out_specs=pl.BlockSpec(
                (T, d_model), lambda b, s, ids: (b * num_seq_tiles + s, 0)),
        ),
        compiler_params=pltpu.CompilerParams(
            dimension_semantics=("parallel", "parallel"),
            vmem_limit_bytes=vmem_limit,
        ),
    )(ids_flat, emb_table.astype(jnp.float32), pos_used)

    # TODO(synk): nn.Dropout is identity in eval mode; training-mode dropout RNG
    # cannot be bit-matched to PyTorch, so it is not applied here.
    del drop_prob
    return out_flat.reshape(B, S_pad, d_model)[:, :S, :]


def make_positional_table(max_len, d_model):
    pos = jnp.arange(max_len, dtype=jnp.float32)[:, None]          # (max_len, 1)
    _2i = jnp.arange(0, d_model, 2, dtype=jnp.float32)             # (d_model/2,)
    angle = pos / jnp.power(10000.0, _2i / d_model)                # (max_len, d_model/2)
    enc = jnp.zeros((max_len, d_model), dtype=jnp.float32)
    enc = enc.at[:, 0::2].set(jnp.sin(angle))
    enc = enc.at[:, 1::2].set(jnp.cos(angle))
    return enc


def make_token_embedding(key, vocab_size, d_model, padding_idx=1):
    # nn.Embedding default init: N(0, 1); row at padding_idx zeroed.
    w = jax.random.normal(key, (vocab_size, d_model), dtype=jnp.float32)
    w = w.at[padding_idx, :].set(0.0)
    return w


if __name__ == "__main__":
    # Small, deterministic config consistent with the module's __init__.
    vocab_size, d_model, max_len = 64, 32, 16
    B, S = 2, 8
    drop_prob = 0.1  # eval mode -> identity

    key = jax.random.PRNGKey(0)
    k_emb, k_ids = jax.random.split(key)

    emb_table = make_token_embedding(k_emb, vocab_size, d_model, padding_idx=1)
    pos_table = make_positional_table(max_len, d_model)
    ids = jax.random.randint(k_ids, (B, S), minval=0, maxval=vocab_size,
                             dtype=jnp.int32)

    out = transformer_embedding(ids, emb_table, pos_table, drop_prob)
    out = jax.block_until_ready(out)

    # Pure-JAX reference for sanity check.
    ref = emb_table[ids] + pos_table[:S, :][None, :, :]
    assert out.shape == (B, S, d_model)
    assert jnp.allclose(out, ref, atol=1e-6, rtol=1e-6), "mismatch vs reference"

    print("KERNEL_OK")
</pallas_src>

<mosaic_0001>
module attributes {stable_mosaic.version = 11 : i64} {
  func.func @_embed_kernel(%arg0: i32, %arg1: i32, %arg2: memref<16xi32, #tpu.memory_space<smem>>, %arg3: memref<64x32xf32, #tpu.memory_space<vmem>>, %arg4: memref<8x32xf32, #tpu.memory_space<vmem>>, %arg5: memref<8x32xf32, #tpu.memory_space<vmem>>) attributes {dimension_semantics = [#tpu.dimension_semantics<parallel>, #tpu.dimension_semantics<parallel>], iteration_bounds = array<i64: 2, 1>, scalar_prefetch = 1 : i64, scratch_operands = 0 : i64, tpu.core_type = #tpu.core_type<tc>, window_params = [{pipeline_mode = #tpu.pipeline_mode<synchronous>, transform_indices = @transform_0, window_bounds = array<i64: 64, 32>}, {transform_indices = @transform_1, window_bounds = array<i64: 8, 32>}, {transform_indices = @transform_2, window_bounds = array<i64: 8, 32>}]} {
    %c8_i32 = arith.constant 8 : i32
    %0 = arith.muli %arg0, %c8_i32 : i32
    %c8_i32_0 = arith.constant 8 : i32
    %1 = arith.muli %arg1, %c8_i32_0 : i32
    %2 = arith.addi %0, %1 : i32
    %c0_i32 = arith.constant 0 : i32
    %3 = arith.addi %2, %c0_i32 : i32
    %4 = arith.index_cast %3 : i32 to index
    %5 = memref.load %arg2[%4] : memref<16xi32, #tpu.memory_space<smem>>
    %6 = arith.index_cast %5 : i32 to index
    %c0 = arith.constant 0 : index
    %7 = vector.load %arg3[%6, %c0] : memref<64x32xf32, #tpu.memory_space<vmem>>, vector<1x32xf32>
    %8 = arith.index_cast %c0_i32 : i32 to index
    %c0_1 = arith.constant 0 : index
    %9 = vector.load %arg5[%8, %c0_1] : memref<8x32xf32, #tpu.memory_space<vmem>>, vector<1x32xf32>
    tpu.vector_store %arg5[%8, %c0_1], %7 {strides = array<i32>} : memref<8x32xf32, #tpu.memory_space<vmem>>, vector<1x32xf32>,
    %c1_i32 = arith.constant 1 : i32
    %10 = arith.addi %2, %c1_i32 : i32
    %11 = arith.index_cast %10 : i32 to index
    %12 = memref.load %arg2[%11] : memref<16xi32, #tpu.memory_space<smem>>
    %13 = arith.index_cast %12 : i32 to index
    %c0_2 = arith.constant 0 : index
    %14 = vector.load %arg3[%13, %c0_2] : memref<64x32xf32, #tpu.memory_space<vmem>>, vector<1x32xf32>
    %15 = arith.index_cast %c1_i32 : i32 to index
    %c0_3 = arith.constant 0 : index
    %16 = vector.load %arg5[%15, %c0_3] : memref<8x32xf32, #tpu.memory_space<vmem>>, vector<1x32xf32>
    tpu.vector_store %arg5[%15, %c0_3], %14 {strides = array<i32>} : memref<8x32xf32, #tpu.memory_space<vmem>>, vector<1x32xf32>,
    %c2_i32 = arith.constant 2 : i32
    %17 = arith.addi %2, %c2_i32 : i32
    %18 = arith.index_cast %17 : i32 to index
    %19 = memref.load %arg2[%18] : memref<16xi32, #tpu.memory_space<smem>>
    %20 = arith.index_cast %19 : i32 to index
    %c0_4 = arith.constant 0 : index
    %21 = vector.load %arg3[%20, %c0_4] : memref<64x32xf32, #tpu.memory_space<vmem>>, vector<1x32xf32>
    %22 = arith.index_cast %c2_i32 : i32 to index
    %c0_5 = arith.constant 0 : index
    %23 = vector.load %arg5[%22, %c0_5] : memref<8x32xf32, #tpu.memory_space<vmem>>, vector<1x32xf32>
    tpu.vector_store %arg5[%22, %c0_5], %21 {strides = array<i32>} : memref<8x32xf32, #tpu.memory_space<vmem>>, vector<1x32xf32>,
    %c3_i32 = arith.constant 3 : i32
    %24 = arith.addi %2, %c3_i32 : i32
    %25 = arith.index_cast %24 : i32 to index
    %26 = memref.load %arg2[%25] : memref<16xi32, #tpu.memory_space<smem>>
    %27 = arith.index_cast %26 : i32 to index
    %c0_6 = arith.constant 0 : index
    %28 = vector.load %arg3[%27, %c0_6] : memref<64x32xf32, #tpu.memory_space<vmem>>, vector<1x32xf32>
    %29 = arith.index_cast %c3_i32 : i32 to index
    %c0_7 = arith.constant 0 : index
    %30 = vector.load %arg5[%29, %c0_7] : memref<8x32xf32, #tpu.memory_space<vmem>>, vector<1x32xf32>
    tpu.vector_store %arg5[%29, %c0_7], %28 {strides = array<i32>} : memref<8x32xf32, #tpu.memory_space<vmem>>, vector<1x32xf32>,
    %c4_i32 = arith.constant 4 : i32
    %31 = arith.addi %2, %c4_i32 : i32
    %32 = arith.index_cast %31 : i32 to index
    %33 = memref.load %arg2[%32] : memref<16xi32, #tpu.memory_space<smem>>
    %34 = arith.index_cast %33 : i32 to index
    %c0_8 = arith.constant 0 : index
    %35 = vector.load %arg3[%34, %c0_8] : memref<64x32xf32, #tpu.memory_space<vmem>>, vector<1x32xf32>
    %36 = arith.index_cast %c4_i32 : i32 to index
    %c0_9 = arith.constant 0 : index
    %37 = vector.load %arg5[%36, %c0_9] : memref<8x32xf32, #tpu.memory_space<vmem>>, vector<1x32xf32>
    tpu.vector_store %arg5[%36, %c0_9], %35 {strides = array<i32>} : memref<8x32xf32, #tpu.memory_space<vmem>>, vector<1x32xf32>,
    %c5_i32 = arith.constant 5 : i32
    %38 = arith.addi %2, %c5_i32 : i32
    %39 = arith.index_cast %38 : i32 to index
    %40 = memref.load %arg2[%39] : memref<16xi32, #tpu.memory_space<smem>>
    %41 = arith.index_cast %40 : i32 to index
    %c0_10 = arith.constant 0 : index
    %42 = vector.load %arg3[%41, %c0_10] : memref<64x32xf32, #tpu.memory_space<vmem>>, vector<1x32xf32>
    %43 = arith.index_cast %c5_i32 : i32 to index
    %c0_11 = arith.constant 0 : index
    %44 = vector.load %arg5[%43, %c0_11] : memref<8x32xf32, #tpu.memory_space<vmem>>, vector<1x32xf32>
    tpu.vector_store %arg5[%43, %c0_11], %42 {strides = array<i32>} : memref<8x32xf32, #tpu.memory_space<vmem>>, vector<1x32xf32>,
    %c6_i32 = arith.constant 6 : i32
    %45 = arith.addi %2, %c6_i32 : i32
    %46 = arith.index_cast %45 : i32 to index
    %47 = memref.load %arg2[%46] : memref<16xi32, #tpu.memory_space<smem>>
    %48 = arith.index_cast %47 : i32 to index
    %c0_12 = arith.constant 0 : index
    %49 = vector.load %arg3[%48, %c0_12] : memref<64x32xf32, #tpu.memory_space<vmem>>, vector<1x32xf32>
    %50 = arith.index_cast %c6_i32 : i32 to index
    %c0_13 = arith.constant 0 : index
    %51 = vector.load %arg5[%50, %c0_13] : memref<8x32xf32, #tpu.memory_space<vmem>>, vector<1x32xf32>
    tpu.vector_store %arg5[%50, %c0_13], %49 {strides = array<i32>} : memref<8x32xf32, #tpu.memory_space<vmem>>, vector<1x32xf32>,
    %c7_i32 = arith.constant 7 : i32
    %52 = arith.addi %2, %c7_i32 : i32
    %53 = arith.index_cast %52 : i32 to index
    %54 = memref.load %arg2[%53] : memref<16xi32, #tpu.memory_space<smem>>
    %55 = arith.index_cast %54 : i32 to index
    %c0_14 = arith.constant 0 : index
    %56 = vector.load %arg3[%55, %c0_14] : memref<64x32xf32, #tpu.memory_space<vmem>>, vector<1x32xf32>
    %57 = arith.index_cast %c7_i32 : i32 to index
    %c0_15 = arith.constant 0 : index
    %58 = vector.load %arg5[%57, %c0_15] : memref<8x32xf32, #tpu.memory_space<vmem>>, vector<1x32xf32>
    tpu.vector_store %arg5[%57, %c0_15], %56 {strides = array<i32>} : memref<8x32xf32, #tpu.memory_space<vmem>>, vector<1x32xf32>,
    %c8_i32_16 = arith.constant 8 : i32
    %c0_17 = arith.constant 0 : index
    %c0_18 = arith.constant 0 : index
    %59 = vector.load %arg5[%c0_17, %c0_18] : memref<8x32xf32, #tpu.memory_space<vmem>>, vector<8x32xf32>
    %c0_19 = arith.constant 0 : index
    %c0_20 = arith.constant 0 : index
    %60 = vector.load %arg4[%c0_19, %c0_20] : memref<8x32xf32, #tpu.memory_space<vmem>>, vector<8x32xf32>
    %61 = arith.addf %59, %60 : vector<8x32xf32>
    %c0_21 = arith.constant 0 : index
    %c0_22 = arith.constant 0 : index
    %62 = vector.load %arg5[%c0_21, %c0_22] : memref<8x32xf32, #tpu.memory_space<vmem>>, vector<8x32xf32>
    tpu.vector_store %arg5[%c0_21, %c0_22], %61 {strides = array<i32>} : memref<8x32xf32, #tpu.memory_space<vmem>>, vector<8x32xf32>,
    return
  }
  func.func @transform_0(%arg0: i32, %arg1: i32, %arg2: memref<16xi32, #tpu.memory_space<smem>>) -> (i32, i32) {
    %c0_i32 = arith.constant 0 : i32
    %c0_i32_0 = arith.constant 0 : i32
    %c0_i32_1 = arith.constant 0 : i32
    return %c0_i32, %c0_i32_0 : i32, i32
  }
  func.func @transform_1(%arg0: i32, %arg1: i32, %arg2: memref<16xi32, #tpu.memory_space<smem>>) -> (i32, i32) {
    %c0_i32 = arith.constant 0 : i32
    %c0_i32_0 = arith.constant 0 : i32
    return %arg1, %c0_i32 : i32, i32
  }
  func.func @transform_2(%arg0: i32, %arg1: i32, %arg2: memref<16xi32, #tpu.memory_space<smem>>) -> (i32, i32) {
    %c1_i32 = arith.constant 1 : i32
    %0 = arith.muli %arg0, %c1_i32 : i32
    %1 = arith.addi %0, %arg1 : i32
    %c0_i32 = arith.constant 0 : i32
    %c0_i32_0 = arith.constant 0 : i32
    return %1, %c0_i32 : i32, i32
  }
}

</mosaic_0001>

<llo_original>
// kernel: tpu_custom_call.1
$region0: #{tpu_custom_call.1}
  #allocation0 [shape = 'u32[]', space=smem, size = 0x4, offset = 0x4, fixed_abs, tag = 'smem constant byte address 0x4 - core index']
  #allocation1 [shape = 'u32[72,128]{1,0:T(1,128)}', space=vmem, size = 0x9000, scoped, tag = 'internal scratch']
  #allocation2 [shape = 's32[1]{0}', space=sflag, size = 0x4, scoped, tag = 'scoped memory for tpu_custom_call.1']
  #allocation3 [shape = 'u8[512]{0}', space=smem, size = 0x200, scoped, tag = 'prefetched SMEM operand 0']
  %s0 = inlined_call_operand.vmem [shape: s32[16], index: 0, kind: input, shape index: {}]
  %s1 = inlined_call_operand.vmem [shape: f32[64,32], index: 1, kind: input, shape index: {}]
  %s2 = inlined_call_operand.vmem [shape: f32[8,32], index: 2, kind: input, shape index: {}]
  %s3 = inlined_call_operand.hbm [shape: f32[16,32], index: 3, kind: output, shape index: {}]
  %s4 = sld [smem:[#allocation0]]
  $region41: #{tpu_custom_call.1} parent=0
    _
  %s6 = ssub.s32 1, %s4
  %s7 = scalar_select 0, %s6, %s4
  %s9 = sshll.u32 %s0, 4
  %s10 = int_to_ptr.vmem [resolvable:$true] %s9
  %12 = dma.vmem_to_smem %s10, 16, [#allocation3], [#allocation2]
  %14 = dma.done [#allocation2], 16
  %15 = sfence
  $region1: #{tpu_custom_call.1} parent=0
    #allocation4 [shape = 'u8[8192]{0}', space=vmem, size = 0x2000, scoped, tag = 'output window, operand 0']
    #allocation5 [shape = 's32[2]{0}', space=sflag, size = 0x8, scoped, tag = 'scoped memory for tpu_custom_call.1']
    %16 = vsyncpa [#allocation5], 0
    %s17 = scalar_lea.sflag [#allocation5], 1
    %18 = vsyncpa %s17, 0
    loop: start=0, step=1, limit=4
    $region2: #{tpu_custom_call.1} parent=1 // loop_pre_header
      _
    $region3: #{tpu_custom_call.1} parent=1 // loop_header
      %s20 = sphi 0, %s24
      %p21 = scmp.ge.s32.totalorder %s20, 4
      %s27 = sphi 0, %s39
      %s28 = sphi 0, %s35
      %s29 = sphi 0, %s27
      %s30 = sphi 0, %s28
      %s31 = sphi 0, %s29
      %s32 = sphi 0, %s30
      %s40 = sphi 0, %s40
      %s42 = sphi 0, %s40
      %s43 = sphi 0, %s42
      %s57 = sphi 0, %s43
      %s63 = sphi 0, %s65
      %s66 = sphi 0, %s63
      %s67 = sphi 0, %s66
      %s83 = sphi 0, %s67
      %s91 = sphi 0, %s93
      %s94 = sphi 0, %s91
      %s95 = sphi 0, %s94
      %s111 = sphi 0, %s95
    $region4: #{tpu_custom_call.1} parent=1 // loop_header_branch
      %23 = sbr.rel (%p21) target = $region8
    $region5: #{tpu_custom_call.1} parent=1 // loop_body
      %s25 = ssub.s32 %s20, 1
      %s26 = ssub.s32 %s20, 2
      %s33 = sadd.s32 1, %s28
      %p34 = scmp.ge.s32.totalorder %s33, 1
      %s35 = scalar_select %p34, 0, %s33
      %s36 = sadd.s32 1, %s27
      %s37 = scalar_select %p34, %s36, %s27
      %p38 = scmp.ge.s32.totalorder %s37, 2
      %s39 = scalar_select %p38, 0, %s37
      %s41 = sadd.s32 %s40, 1
      %p44 = scmp.eq.s32.totalorder %s20, 1
      %p45 = scmp.ne.s32.totalorder %s40, %s42
      %p46 = scmp.eq.s32.totalorder %s20, 0
      %p47 = por %p45, %p46
      %p48 = scmp.ne.s32.totalorder %s40, %s42
      %p49 = scmp.eq.s32.totalorder %s25, 1
      %p50 = por %p48, %p49
      %p51 = scmp.ne.s32.totalorder %s42, %s43
      %p52 = scmp.eq.s32.totalorder %s25, 0
      %p53 = por %p51, %p52
      %p54 = scmp.ne.s32.totalorder %s42, %s43
      %p55 = scmp.eq.s32.totalorder %s26, 1
      %p56 = por %p54, %p55
      %p58 = scmp.ne.s32.totalorder %s43, %s57
      %p59 = scmp.eq.s32.totalorder %s26, 0
      %p60 = por %p58, %p59
      %s61 = ssub.s32 %s28, %s35
      %p62 = scmp.eq.s32.totalorder %s61, 0
      %s64 = sadd.s32 %s63, 1
      %s65 = scalar_select %p62, %s63, %s64
      %p68 = pneg %p62
      %p69 = scmp.eq.s32.totalorder %s20, 1
      %p70 = por %p68, %p69
      %p71 = scmp.ne.s32.totalorder %s63, %s66
      %p72 = scmp.eq.s32.totalorder %s20, 0
      %p73 = por %p71, %p72
      %p74 = scmp.ne.s32.totalorder %s63, %s66
      %p75 = scmp.eq.s32.totalorder %s25, 1
      %p76 = por %p74, %p75
      %p77 = scmp.ne.s32.totalorder %s66, %s67
      %p78 = scmp.eq.s32.totalorder %s25, 0
      %p79 = por %p77, %p78
      %p80 = scmp.ne.s32.totalorder %s66, %s67
      %p81 = scmp.eq.s32.totalorder %s26, 1
      %p82 = por %p80, %p81
      %p84 = scmp.ne.s32.totalorder %s67, %s83
      %p85 = scmp.eq.s32.totalorder %s26, 0
      %p86 = por %p84, %p85
      %s87 = sadd.s32 %s27, %s28
      %s88 = sadd.s32 %s39, %s35
      %s89 = ssub.s32 %s87, %s88
      %p90 = scmp.eq.s32.totalorder %s89, 0
      %s92 = sadd.s32 %s91, 1
      %s93 = scalar_select %p90, %s91, %s92
      %p96 = pneg %p90
      %p97 = scmp.eq.s32.totalorder %s20, 1
      %p98 = por %p96, %p97
      %p99 = scmp.ne.s32.totalorder %s91, %s94
      %p100 = scmp.eq.s32.totalorder %s20, 0
      %p101 = por %p99, %p100
      %p102 = scmp.ne.s32.totalorder %s91, %s94
      %p103 = scmp.eq.s32.totalorder %s25, 1
      %p104 = por %p102, %p103
      %p105 = scmp.ne.s32.totalorder %s94, %s95
      %p106 = scmp.eq.s32.totalorder %s25, 0
      %p107 = por %p105, %p106
      %p108 = scmp.ne.s32.totalorder %s94, %s95
      %p109 = scmp.eq.s32.totalorder %s26, 1
      %p110 = por %p108, %p109
      %p112 = scmp.ne.s32.totalorder %s95, %s111
      %p113 = scmp.eq.s32.totalorder %s26, 0
      %p114 = por %p112, %p113
      %p115 = scmp.le.s32.totalorder 1, %s20
      %p116 = scmp.lt.s32.totalorder %s20, 3
      %p117 = pnand %p115, %p116
      %p118 = pneg %p117
      // Predicated region
      $region9: #{tpu_custom_call.1} parent=5 // pred_check
        _
      $region10: #{tpu_custom_call.1} parent=5 // pred_check_branch
        %120 = sbr.rel (%p117) target = $region12
      $region11: #{tpu_custom_call.1} parent=5 // pred_region
        %s121 = ssub.s32 %s20, 1
        // Predicated region
        $region13: #{tpu_custom_call.1} parent=11 // pred_check
          %p122 = pneg %p53
        $region14: #{tpu_custom_call.1} parent=11 // pred_check_branch
          %124 = sbr.rel (%p122) target = $region16
        $region15: #{tpu_custom_call.1} parent=11 // pred_region
          _
        $region16: #{tpu_custom_call.1} parent=11 // pred_fallthru
          _
        // Predicated region
        $region17: #{tpu_custom_call.1} parent=11 // pred_check
          %p125 = pneg %p79
        $region18: #{tpu_custom_call.1} parent=11 // pred_check_branch
          %127 = sbr.rel (%p125) target = $region20
        $region19: #{tpu_custom_call.1} parent=11 // pred_region
          %p128 = scmp.lt.s32.totalorder %s30, 0
          %s129 = scalar_select %p128, %s30, 0
          %s130 = smul.addr %s129, 8
          %s131 = scalar_lea.vmem %s2, %s130
        $region20: #{tpu_custom_call.1} parent=11 // pred_fallthru
          _
      $region12: #{tpu_custom_call.1} parent=5 // pred_fallthru
        _
      %p132 = scmp.lt.s32.totalorder %s20, 2
      // Predicated region
      $region21: #{tpu_custom_call.1} parent=5 // pred_check
        %p133 = pneg %p132
      $region22: #{tpu_custom_call.1} parent=5 // pred_check_branch
        %135 = sbr.rel (%p133) target = $region24
      $region23: #{tpu_custom_call.1} parent=5 // pred_region
        _
      $region24: #{tpu_custom_call.1} parent=5 // pred_fallthru
        _
      %p136 = scmp.le.s32.totalorder 1, %s20
      %p137 = scmp.lt.s32.totalorder %s20, 3
      %p138 = pnand %p136, %p137
      %p139 = pneg %p138
      // Predicated region
      $region25: #{tpu_custom_call.1} parent=5 // pred_check
        _
      $region26: #{tpu_custom_call.1} parent=5 // pred_check_branch
        %141 = sbr.rel (%p138) target = $region28
      $region27: #{tpu_custom_call.1} parent=5 // pred_region
        %s142 = ssub.s32 %s20, 1
        %p143 = pneg %p53
        %p144 = pneg %p50
        %p145 = scmp.lt.s32.totalorder %s30, 0
        %s146 = scalar_select %p145, %s30, 0
        %s147 = smul.addr %s146, 8
        %s148 = scalar_lea.vmem %s2, %s147
        %p149 = pneg %p79
        %p150 = pneg %p76
        %p151 = pneg %p107
        %p152 = pneg %p104
        %s153 = sand.u32 %s94, 1
        %s154 = scalar_lea.sflag [#allocation5], %s153
        %s155 = sand.u32 %s94, 1
        %s156 = smul.addr %s155, 8
        %s157 = scalar_lea.vmem [#allocation4], %s156
        %p158 = scmp.lt.s32.totalorder %s30, 0
        %s159 = scalar_select %p158, %s30, 0
        %s160 = smul.addr %s159, 8
        %s161 = scalar_lea.vmem %s2, %s160
        %s162 = sadd.s32 %s29, %s30
        %s163 = smul.u32 %s29, 8
        %s164 = smul.u32 %s30, 8
        %s165 = sadd.s32 %s163, %s164
        %s166 = sld [smem:[#allocation3 + %s165]]
        %s167 = scalar_lea.vmem %s1, %s166
        %v168 = vld [vmem:[%s167] sm:$0x1]
        %vm169 = vcmask 253952
        %170 = vst.msk [vmem:[%s157] sm:$0x1] %vm169, %v168
        %s171 = sadd.s32 %s165, 1
        %s172 = sld [smem:[#allocation3 + %s171]]
        %s173 = scalar_lea.vmem %s1, %s172
        %v174 = vld [vmem:[%s173] sm:$0x1]
        %175 = vst.msk [vmem:[%s157 + $0x1] sm:$0x1] %vm169, %v174
        %s176 = sadd.s32 %s165, 2
        %s177 = sld [smem:[#allocation3 + %s176]]
        %s178 = scalar_lea.vmem %s1, %s177
        %v179 = vld [vmem:[%s178] sm:$0x1]
        %180 = vst.msk [vmem:[%s157 + $0x2] sm:$0x1] %vm169, %v179
        %s181 = sadd.s32 %s165, 3
        %s182 = sld [smem:[#allocation3 + %s181]]
        %s183 = scalar_lea.vmem %s1, %s182
        %v184 = vld [vmem:[%s183] sm:$0x1]
        %185 = vst.msk [vmem:[%s157 + $0x3] sm:$0x1] %vm169, %v184
        %s186 = sadd.s32 %s165, 4
        %s187 = sld [smem:[#allocation3 + %s186]]
        %s188 = scalar_lea.vmem %s1, %s187
        %v189 = vld [vmem:[%s188] sm:$0x1]
        %190 = vst.msk [vmem:[%s157 + $0x4] sm:$0x1] %vm169, %v189
        %s191 = sadd.s32 %s165, 5
        %s192 = sld [smem:[#allocation3 + %s191]]
        %s193 = scalar_lea.vmem %s1, %s192
        %v194 = vld [vmem:[%s193] sm:$0x1]
        %195 = vst.msk [vmem:[%s157 + $0x5] sm:$0x1] %vm169, %v194
        %s196 = sadd.s32 %s165, 6
        %s197 = sld [smem:[#allocation3 + %s196]]
        %s198 = scalar_lea.vmem %s1, %s197
        %v199 = vld [vmem:[%s198] sm:$0x1]
        %200 = vst.msk [vmem:[%s157 + $0x6] sm:$0x1] %vm169, %v199
        %s201 = sadd.s32 %s165, 7
        %s202 = sld [smem:[#allocation3 + %s201]]
        %s203 = scalar_lea.vmem %s1, %s202
        %v204 = vld [vmem:[%s203] sm:$0x1]
        %205 = vst.msk [vmem:[%s157 + $0x7] sm:$0x1] %vm169, %v204
        %v206 = vld [vmem:[%s157] sm:$0xff]
        %v207 = vld [vmem:[%s161] sm:$0xff]
        %v208 = vadd.f32 %v206, %v207
        %vm209 = vcmask 261120
        %210 = vst.msk [vmem:[%s157] sm:$0xff] %vm209, %v208
        %s211 = sand.u32 %s94, 1
        %s212 = scalar_lea.sflag [#allocation5], %s211
        %s213 = sand.u32 %s94, 1
        %s214 = smul.addr %s213, 8
        %s215 = scalar_lea.vmem [#allocation4], %s214
        // Predicated region
        $region29: #{tpu_custom_call.1} parent=27 // pred_check
          %p216 = pneg %p104
        $region30: #{tpu_custom_call.1} parent=27 // pred_check_branch
          %218 = sbr.rel (%p216) target = $region32
        $region31: #{tpu_custom_call.1} parent=27 // pred_region
          %s219 = sadd.s32 %s29, %s30
          %221 = vsyncadd %s212, 0
          %s222 = smul.addr %s219, 8
          %s223 = scalar_lea.hbm %s3, %s222
          %s225 = sshll.u32 %s215, 4
          %s226 = int_to_ptr.vmem [resolvable:$true] %s225
          %s227 = sshll.u32 %s223, 4
          %s228 = int_to_ptr.hbm [resolvable:$true] %s227
          %230 = dma.vmem_to_hbm [thread:$0]  %s226, 128, %s228, %s212
        $region32: #{tpu_custom_call.1} parent=27 // pred_fallthru
          _
      $region28: #{tpu_custom_call.1} parent=5 // pred_fallthru
        _
      %p231 = scmp.le.s32.totalorder 2, %s20
      // Predicated region
      $region33: #{tpu_custom_call.1} parent=5 // pred_check
        %p232 = pneg %p231
      $region34: #{tpu_custom_call.1} parent=5 // pred_check_branch
        %234 = sbr.rel (%p232) target = $region36
      $region35: #{tpu_custom_call.1} parent=5 // pred_region
        %s235 = ssub.s32 %s20, 2
        // Predicated region
        $region37: #{tpu_custom_call.1} parent=35 // pred_check
          %p236 = pneg %p110
        $region38: #{tpu_custom_call.1} parent=35 // pred_check_branch
          %238 = sbr.rel (%p236) target = $region40
        $region39: #{tpu_custom_call.1} parent=35 // pred_region
          %s239 = sand.u32 %s95, 1
          %s240 = scalar_lea.sflag [#allocation5], %s239
          %s241 = sand.u32 %s95, 1
          %s242 = smul.addr %s241, 8
          %s243 = scalar_lea.vmem [#allocation4], %s242
          %245 = dma.done %s240, 128
        $region40: #{tpu_custom_call.1} parent=35 // pred_fallthru
          _
      $region36: #{tpu_custom_call.1} parent=5 // pred_fallthru
        _
    $region6: #{tpu_custom_call.1} parent=1 // loop_footer
      %s24 = sadd.s32 1, %s20
    $region7: #{tpu_custom_call.1} parent=1 // loop_footer_branch
      %19 = sbr.rel target = $region3
    $region8: #{tpu_custom_call.1} parent=1 // loop_exit
      _
    %246 = vsyncpa [#allocation5], 1
    %s247 = scalar_lea.sflag [#allocation5], 1
    %248 = vsyncpa %s247, 1

</llo_original>
